<compile_context>
chip_gen: v6e
topology: v6e:2x2x1
jax: 0.10.0
libtpu: 0.0.40
codegen_flags: <defaults>
</compile_context>

<pallas_src>
import jax
import jax.numpy as jnp
from jax.experimental import pallas as pl
from jax.experimental.pallas import tpu as pltpu

LANES = 128
MAX_BLOCK_ROWS = 8192          # 8192 x 128 f32 = 4 MiB per x block
VMEM_LIMIT_BYTES = 32 * 1024 * 1024


def _round_up(a, b):
    return (a + b - 1) // b * b


def _focal_elementwise(x, t, alpha, gamma):
    """Per-element focal loss, f32 in / f32 out. Matches the PyTorch module."""
    # Numerically stable binary_cross_entropy_with_logits:
    #   max(x, 0) - x*t + log1p(exp(-|x|))
    bce = jnp.maximum(x, 0.0) - x * t + jnp.log1p(jnp.exp(-jnp.abs(x)))
    pt = jnp.exp(-bce)
    one_minus_pt = 1.0 - pt
    # (1 - pt) ** gamma; integer gamma uses repeated VPU multiplies.
    if float(gamma).is_integer():
        g = int(gamma)
        if g <= 0:
            mod = jnp.ones_like(bce)
        else:
            mod = one_minus_pt
            for _ in range(g - 1):
                mod = mod * one_minus_pt
    else:
        mod = one_minus_pt ** gamma
    return alpha * mod * bce


def _make_focal_sum_kernel(block_rows, kps, nblocks, valid_rows_last,
                           alpha, gamma, grid_padded):
    """Reduction kernel: accumulates the focal loss sum into (8,128) partials."""
    has_partial = valid_rows_last < block_rows

    def kernel(x_ref, t_ref, o_ref, acc_ref):
        s = pl.program_id(0)
        k = pl.program_id(1)
        blk = s * kps + k

        @pl.when(k == 0)
        def _init():
            acc_ref[...] = jnp.zeros_like(acc_ref)

        x = x_ref[...].astype(jnp.float32)
        t = t_ref[...].astype(jnp.float32)
        fl = _focal_elementwise(x, t, alpha, gamma)

        def _accumulate(v):
            # Cross-tile (leading-axis) sum only: pure VPU adds in the hot
            # loop; the single cross-lane/sublane reduce happens in XLA after
            # the kernel.
            acc_ref[...] += jnp.sum(v.reshape(block_rows // 8, 8, LANES), axis=0)

        if has_partial:
            # Full blocks: no mask at all.
            @pl.when(blk < nblocks - 1)
            def _full():
                _accumulate(fl)

            # The single ragged last block: per-row mask (runs exactly once).
            @pl.when(blk == nblocks - 1)
            def _last():
                row_id = jax.lax.broadcasted_iota(
                    jnp.int32, (block_rows, LANES), 0)
                _accumulate(jnp.where(row_id < valid_rows_last, fl, 0.0))
            # (Grid-padding duplicates have blk == nblocks and hit neither.)
        else:
            if grid_padded:
                # Scalar gate instead of element-wise masking for the (at
                # most one) duplicate block of the cdiv-padded grid.
                @pl.when(blk < nblocks)
                def _ok():
                    _accumulate(fl)
            else:
                _accumulate(fl)

        @pl.when(k == pl.num_programs(1) - 1)
        def _fin():
            o_ref[...] = acc_ref[...].reshape(1, 8, LANES)

    return kernel


def _make_focal_elem_kernel(alpha, gamma):
    """Elementwise kernel for reduction='none'."""
    def kernel(x_ref, t_ref, o_ref):
        x = x_ref[...].astype(jnp.float32)
        t = t_ref[...].astype(jnp.float32)
        o_ref[...] = _focal_elementwise(x, t, alpha, gamma)
    return kernel


def _focal_none(x_flat, t_flat, n, out_shape, alpha, gamma):
    rows = pl.cdiv(n, LANES)
    pad = rows * LANES - n
    if pad:
        x_flat = jnp.pad(x_flat, (0, pad))
        t_flat = jnp.pad(t_flat, (0, pad), constant_values=1)
    x2 = x_flat.reshape(rows, LANES)
    t2 = t_flat.reshape(rows, LANES)

    block_rows = rows if rows <= MAX_BLOCK_ROWS else MAX_BLOCK_ROWS
    nblocks = pl.cdiv(rows, block_rows)

    out = pl.pallas_call(
        _make_focal_elem_kernel(float(alpha), gamma),
        out_shape=jax.ShapeDtypeStruct((rows, LANES), jnp.float32),
        grid_spec=pltpu.PrefetchScalarGridSpec(
            num_scalar_prefetch=0,
            grid=(nblocks,),
            in_specs=[pl.BlockSpec((block_rows, LANES), lambda i: (i, 0)),
                      pl.BlockSpec((block_rows, LANES), lambda i: (i, 0))],
            out_specs=pl.BlockSpec((block_rows, LANES), lambda i: (i, 0)),
        ),
        compiler_params=pltpu.CompilerParams(
            dimension_semantics=("parallel",),
            vmem_limit_bytes=VMEM_LIMIT_BYTES,
        ),
    )(x2, t2)
    return out.reshape(-1)[:n].reshape(out_shape)


def focal_loss_pallas(inputs, targets, alpha=1.0, gamma=2, reduction="mean"):
    """Equivalent of FocalLoss(alpha, gamma, reduction).forward(inputs, targets)."""
    n = int(inputs.size)
    x = inputs.reshape(-1)
    t = targets.reshape(-1)

    if reduction == "none":
        return _focal_none(x, t, n, inputs.shape, alpha, gamma)
    if reduction not in ("mean", "sum"):
        raise ValueError("reduction must be 'mean', 'sum' or 'none'")

    rows = pl.cdiv(n, LANES)
    if rows <= MAX_BLOCK_ROWS:
        # Single block: round rows up to a multiple of 8 so the accumulator
        # path is always the (block_rows//8, 8, 128) tile sum.
        block_rows = _round_up(max(rows, 8), 8)
        rows_p = block_rows
    else:
        block_rows = MAX_BLOCK_ROWS
        rows_p = rows

    pad = rows_p * LANES - n
    if pad:
        # Loss-neutral padding: x=200, t=1 -> BCE == 0 and (1 - pt) == 0
        # exactly in f32, so padded elements contribute exactly 0 to the sum
        # and no per-element mask is needed in the hot loop.
        x = jnp.pad(x, (0, pad), constant_values=200.0)
        t = jnp.pad(t, (0, pad), constant_values=1)
    x2 = x.reshape(rows_p, LANES)
    t2 = t.reshape(rows_p, LANES)

    nblocks = pl.cdiv(rows_p, block_rows)
    valid_rows_last = rows_p - (nblocks - 1) * block_rows

    # Leading split only when there is enough work to share between the two
    # TensorCores of v7x; on single-TC chips (v5e/v6e) a split of 1 avoids any
    # duplicated-block waste.
    splits = 2 if nblocks >= 4 else 1
    kps = pl.cdiv(nblocks, splits)
    grid_padded = splits * kps > nblocks

    if grid_padded:
        def in_map(s, k):
            # Clamp so padded grid steps never index past the last real block;
            # their accumulation is skipped by a scalar gate in the kernel.
            return (jnp.minimum(s * kps + k, nblocks - 1), 0)
    else:
        def in_map(s, k):
            return (s * kps + k, 0)

    kernel = _make_focal_sum_kernel(block_rows, kps, nblocks, valid_rows_last,
                                    float(alpha), gamma, grid_padded)

    partials = pl.pallas_call(
        kernel,
        out_shape=jax.ShapeDtypeStruct((splits, 8, LANES), jnp.float32),
        grid_spec=pltpu.PrefetchScalarGridSpec(
            num_scalar_prefetch=0,
            grid=(splits, kps),
            in_specs=[pl.BlockSpec((block_rows, LANES), in_map),
                      pl.BlockSpec((block_rows, LANES), in_map)],
            out_specs=pl.BlockSpec((1, 8, LANES), lambda s, k: (s, 0, 0)),
            scratch_shapes=[pltpu.VMEM((8, LANES), jnp.float32)],
        ),
        compiler_params=pltpu.CompilerParams(
            dimension_semantics=("parallel", "arbitrary"),
            vmem_limit_bytes=VMEM_LIMIT_BYTES,
        ),
    )(x2, t2)

    total = jnp.sum(partials)
    if reduction == "mean":
        return total / jnp.float32(n)
    return total


def focal_loss_ref(inputs, targets, alpha=1.0, gamma=2.0, reduction="mean"):
    """Pure-JAX reference (mirrors the PyTorch module)."""
    x = inputs.astype(jnp.float32)
    t = targets.astype(jnp.float32)
    bce = jnp.maximum(x, 0.0) - x * t + jnp.log1p(jnp.exp(-jnp.abs(x)))
    pt = jnp.exp(-bce)
    fl = alpha * (1.0 - pt) ** gamma * bce
    if reduction == "mean":
        return fl.mean()
    if reduction == "sum":
        return fl.sum()
    return fl


if __name__ == "__main__":
    key = jax.random.PRNGKey(0)
    k1, k2, k3, k4 = jax.random.split(key, 4)

    # Primary case: NCHW logits with binary targets shipped as int8
    # (5 bytes/element HBM traffic; cast to f32 in-kernel == targets.float()).
    B, C, H, W = 2, 4, 16, 16
    x = jax.random.normal(k1, (B, C, H, W), dtype=jnp.float32)
    tgt = (jax.random.uniform(k2, (B, C, H, W)) > 0.5).astype(jnp.int8)

    loss = jax.block_until_ready(focal_loss_pallas(x, tgt))
    ref = focal_loss_ref(x, tgt)
    assert jnp.allclose(loss, ref, atol=1e-5, rtol=1e-5), (loss, ref)

    # Ragged size (not a multiple of 128) exercising the loss-neutral padding,
    # with non-default alpha and 'sum' reduction, float targets.
    x2 = jax.random.normal(k3, (3, 5, 7, 11), dtype=jnp.float32)
    t2 = (jax.random.uniform(k4, (3, 5, 7, 11)) > 0.5).astype(jnp.float32)
    loss2 = jax.block_until_ready(
        focal_loss_pallas(x2, t2, alpha=0.25, gamma=2, reduction="sum"))
    ref2 = focal_loss_ref(x2, t2, alpha=0.25, gamma=2, reduction="sum")
    assert jnp.allclose(loss2, ref2, atol=1e-3, rtol=1e-5), (loss2, ref2)

    # reduction='none' elementwise path.
    out3 = jax.block_until_ready(focal_loss_pallas(x, tgt, reduction="none"))
    ref3 = focal_loss_ref(x, tgt, reduction="none")
    assert out3.shape == x.shape
    assert jnp.allclose(out3, ref3, atol=1e-5, rtol=1e-4)

    print("KERNEL_OK")
</pallas_src>

<mosaic_0001>
module attributes {stable_mosaic.version = 11 : i64} {
  func.func @kernel(%arg0: i32, %arg1: i32, %arg2: memref<16x128xf32, #tpu.memory_space<vmem>>, %arg3: memref<16x128xi8, #tpu.memory_space<vmem>>, %arg4: memref<1x8x128xf32, #tpu.memory_space<vmem>>, %arg5: memref<8x128xf32, #tpu.memory_space<vmem>>) attributes {dimension_semantics = [#tpu.dimension_semantics<parallel>, #tpu.dimension_semantics<arbitrary>], iteration_bounds = array<i64: 1, 1>, scalar_prefetch = 0 : i64, scratch_operands = 1 : i64, tpu.core_type = #tpu.core_type<tc>, window_params = [{transform_indices = @transform_0, window_bounds = array<i64: 16, 128>}, {transform_indices = @transform_1, window_bounds = array<i64: 16, 128>}, {transform_indices = @transform_2, window_bounds = array<i64: 1, 8, 128>}]} {
    %c0_i32 = arith.constant 0 : i32
    %0 = arith.cmpi eq, %arg1, %c0_i32 : i32
    %1 = arith.extui %0 : i1 to i32
    %c0_i32_0 = arith.constant 0 : i32
    %2 = arith.cmpi ne, %1, %c0_i32_0 : i32
    scf.if %2 {
      %cst_15 = arith.constant 0.000000e+00 : f32
      %33 = vector.broadcast %cst_15 : f32 to vector<8x128xf32>
      %c0_16 = arith.constant 0 : index
      %c0_17 = arith.constant 0 : index
      %34 = vector.load %arg5[%c0_16, %c0_17] : memref<8x128xf32, #tpu.memory_space<vmem>>, vector<8x128xf32>
      tpu.vector_store %arg5[%c0_16, %c0_17], %33 {strides = array<i32>} : memref<8x128xf32, #tpu.memory_space<vmem>>, vector<8x128xf32>,
    } else {
    }
    %c0 = arith.constant 0 : index
    %c0_1 = arith.constant 0 : index
    %3 = vector.load %arg2[%c0, %c0_1] : memref<16x128xf32, #tpu.memory_space<vmem>>, vector<16x128xf32>
    %c0_2 = arith.constant 0 : index
    %c0_3 = arith.constant 0 : index
    %4 = vector.load %arg3[%c0_2, %c0_3] : memref<16x128xi8, #tpu.memory_space<vmem>>, vector<16x128xi8>
    %5 = arith.sitofp %4 : vector<16x128xi8> to vector<16x128xf32>
    %cst = arith.constant 0.000000e+00 : f32
    %6 = vector.broadcast %cst : f32 to vector<16x128xf32>
    %7 = arith.maximumf %3, %6 : vector<16x128xf32>
    %8 = arith.mulf %3, %5 : vector<16x128xf32>
    %9 = arith.subf %7, %8 : vector<16x128xf32>
    %10 = math.absf %3 : vector<16x128xf32>
    %cst_4 = arith.constant 0.000000e+00 : f32
    %11 = vector.broadcast %cst_4 : f32 to vector<16x128xf32>
    %12 = arith.subf %11, %10 : vector<16x128xf32>
    %13 = math.exp %12 : vector<16x128xf32>
    %14 = math.log1p %13 : vector<16x128xf32>
    %15 = arith.addf %9, %14 : vector<16x128xf32>
    %cst_5 = arith.constant 0.000000e+00 : f32
    %16 = vector.broadcast %cst_5 : f32 to vector<16x128xf32>
    %17 = arith.subf %16, %15 : vector<16x128xf32>
    %18 = math.exp %17 : vector<16x128xf32>
    %cst_6 = arith.constant 1.000000e+00 : f32
    %19 = vector.broadcast %cst_6 : f32 to vector<16x128xf32>
    %20 = arith.subf %19, %18 : vector<16x128xf32>
    %21 = arith.mulf %20, %20 : vector<16x128xf32>
    %cst_7 = arith.constant 1.000000e+00 : f32
    %22 = vector.broadcast %cst_7 : f32 to vector<16x128xf32>
    %23 = arith.mulf %22, %21 : vector<16x128xf32>
    %24 = arith.mulf %23, %15 : vector<16x128xf32>
    %c0_8 = arith.constant 0 : index
    %c0_9 = arith.constant 0 : index
    %25 = vector.load %arg5[%c0_8, %c0_9] : memref<8x128xf32, #tpu.memory_space<vmem>>, vector<8x128xf32>
    %26 = vector.shape_cast %24 : vector<16x128xf32> to vector<2x8x128xf32>
    %cst_10 = arith.constant dense<0.000000e+00> : vector<8x128xf32>
    %27 = vector.multi_reduction <add>, %26, %cst_10 [0] : vector<2x8x128xf32> to vector<8x128xf32>
    %28 = arith.addf %25, %27 : vector<8x128xf32>
    %c0_11 = arith.constant 0 : index
    %c0_12 = arith.constant 0 : index
    %29 = vector.load %arg5[%c0_11, %c0_12] : memref<8x128xf32, #tpu.memory_space<vmem>>, vector<8x128xf32>
    tpu.vector_store %arg5[%c0_11, %c0_12], %28 {strides = array<i32>} : memref<8x128xf32, #tpu.memory_space<vmem>>, vector<8x128xf32>,
    %c0_i32_13 = arith.constant 0 : i32
    %30 = arith.cmpi eq, %arg1, %c0_i32_13 : i32
    %31 = arith.extui %30 : i1 to i32
    %c0_i32_14 = arith.constant 0 : i32
    %32 = arith.cmpi ne, %31, %c0_i32_14 : i32
    scf.if %32 {
      %c0_15 = arith.constant 0 : index
      %c0_16 = arith.constant 0 : index
      %33 = vector.load %arg5[%c0_15, %c0_16] : memref<8x128xf32, #tpu.memory_space<vmem>>, vector<8x128xf32>
      %34 = vector.shape_cast %33 : vector<8x128xf32> to vector<1x8x128xf32>
      %c0_17 = arith.constant 0 : index
      %c0_18 = arith.constant 0 : index
      %c0_19 = arith.constant 0 : index
      %35 = vector.load %arg4[%c0_17, %c0_18, %c0_19] : memref<1x8x128xf32, #tpu.memory_space<vmem>>, vector<1x8x128xf32>
      tpu.vector_store %arg4[%c0_17, %c0_18, %c0_19], %34 {strides = array<i32>} : memref<1x8x128xf32, #tpu.memory_space<vmem>>, vector<1x8x128xf32>,
    } else {
    }
    return
  }
  func.func @transform_0(%arg0: i32, %arg1: i32) -> (i32, i32) {
    %c1_i32 = arith.constant 1 : i32
    %0 = arith.muli %arg0, %c1_i32 : i32
    %1 = arith.addi %0, %arg1 : i32
    %c0_i32 = arith.constant 0 : i32
    %c0_i32_0 = arith.constant 0 : i32
    return %1, %c0_i32 : i32, i32
  }
  func.func @transform_1(%arg0: i32, %arg1: i32) -> (i32, i32) {
    %c1_i32 = arith.constant 1 : i32
    %0 = arith.muli %arg0, %c1_i32 : i32
    %1 = arith.addi %0, %arg1 : i32
    %c0_i32 = arith.constant 0 : i32
    %c0_i32_0 = arith.constant 0 : i32
    return %1, %c0_i32 : i32, i32
  }
  func.func @transform_2(%arg0: i32, %arg1: i32) -> (i32, i32, i32) {
    %c0_i32 = arith.constant 0 : i32
    %c0_i32_0 = arith.constant 0 : i32
    %c0_i32_1 = arith.constant 0 : i32
    return %arg0, %c0_i32, %c0_i32_0 : i32, i32, i32
  }
}

</mosaic_0001>

<llo_original>
// kernel: tpu_custom_call.1
$region0: #{tpu_custom_call.1}
  #allocation0 [shape = 'u32[]', space=smem, size = 0x4, offset = 0x4, fixed_abs, tag = 'smem constant byte address 0x4 - core index']
  #allocation1 [shape = 'u32[144,128]{1,0:T(1,128)}', space=vmem, size = 0x12000, scoped, tag = 'internal scratch']
  #allocation2 [shape = 'f32[8,128]{1,0:T(8,128)}', space=vmem, size = 0x1000, scoped, tag = 'scratch operand']
  %s0 = inlined_call_operand.hbm [shape: f32[16,128], index: 0, kind: input, shape index: {}]
  %s1 = inlined_call_operand.hbm [shape: s8[16,128], index: 1, kind: input, shape index: {}]
  %s2 = inlined_call_operand.hbm [shape: f32[1,8,128], index: 2, kind: output, shape index: {}]
  %s3 = sld [smem:[#allocation0]]
  $region34: #{tpu_custom_call.1} parent=0
    _
  %s5 = ssub.s32 1, %s3
  %s6 = scalar_select 0, %s5, %s3
  $region1: #{tpu_custom_call.1} parent=0
    #allocation3 [shape = 'u8[8192]{0}', space=vmem, size = 0x2000, scoped, tag = 'input window, operand 0, single buffered']
    #allocation4 [shape = 's32[1]{0}', space=sflag, size = 0x4, scoped, tag = 'scoped memory for tpu_custom_call.1']
    #allocation5 [shape = 's32[1]{0}', space=sflag, size = 0x4, scoped, tag = 'scoped memory for tpu_custom_call.1']
    #allocation6 [shape = 'u8[2048]{0}', space=vmem, size = 0x800, scoped, tag = 'input window, operand 1, single buffered']
    #allocation7 [shape = 's32[1]{0}', space=sflag, size = 0x4, scoped, tag = 'scoped memory for tpu_custom_call.1']
    #allocation8 [shape = 'u8[4096]{0}', space=vmem, size = 0x1000, scoped, tag = 'output window, operand 0, single buffered']
    %7 = vsyncpa [#allocation4], 0
    %8 = vsyncpa [#allocation7], 0
    %9 = vsyncpa [#allocation5], 0
    // Predicated region
    $region2: #{tpu_custom_call.1} parent=1 // pred_check
      _
    $region3: #{tpu_custom_call.1} parent=1 // pred_check_branch
      %11 = sbr.rel (0) target = $region5
    $region4: #{tpu_custom_call.1} parent=1 // pred_region
      %s12 = sadd.s32 0, 0
      %s13 = smul.u32 2, %s12
      %s15 = ssub.s32 256, 256
      %16 = vsyncadd [#allocation4], %s15
      %s17 = smul.addr %s13, 128
      %s18 = scalar_lea.hbm %s0, %s17
      %s19 = sshll.u32 [#allocation3], 4
      %s20 = int_to_ptr.vmem [resolvable:$true] %s19
      %25 = dma.hbm_to_vmem [thread:$0]  %s18, 256, %s20, [#allocation4], 128, 128, 8
    $region5: #{tpu_custom_call.1} parent=1 // pred_fallthru
      _
    // Predicated region
    $region6: #{tpu_custom_call.1} parent=1 // pred_check
      _
    $region7: #{tpu_custom_call.1} parent=1 // pred_check_branch
      %27 = sbr.rel (0) target = $region9
    $region8: #{tpu_custom_call.1} parent=1 // pred_region
      %s28 = sadd.s32 0, 0
      %s29 = smul.u32 2, %s28
      %s31 = ssub.s32 64, 64
      %32 = vsyncadd [#allocation7], %s31
      %s33 = smul.addr %s29, 32
      %s34 = scalar_lea.hbm %s1, %s33
      %s35 = sshll.u32 [#allocation6], 4
      %s36 = int_to_ptr.vmem [resolvable:$true] %s35
      %41 = dma.hbm_to_vmem [thread:$0]  %s34, 64, %s36, [#allocation7], 32, 32, 2
    $region9: #{tpu_custom_call.1} parent=1 // pred_fallthru
      _
    // Predicated region
    $region10: #{tpu_custom_call.1} parent=1 // pred_check
      _
    $region11: #{tpu_custom_call.1} parent=1 // pred_check_branch
      %43 = sbr.rel (0) target = $region13
    $region12: #{tpu_custom_call.1} parent=1 // pred_region
      %44 = dma.done [#allocation4], 256
    $region13: #{tpu_custom_call.1} parent=1 // pred_fallthru
      _
    // Predicated region
    $region14: #{tpu_custom_call.1} parent=1 // pred_check
      _
    $region15: #{tpu_custom_call.1} parent=1 // pred_check_branch
      %46 = sbr.rel (0) target = $region17
    $region16: #{tpu_custom_call.1} parent=1 // pred_region
      %47 = dma.done [#allocation7], 64
    $region17: #{tpu_custom_call.1} parent=1 // pred_fallthru
      _
    %s48 = sadd.s32 0, 0
    %s49 = smul.u32 2, %s48
    %s50 = sadd.s32 0, 0
    %s51 = smul.u32 2, %s50
    %p52 = scmp.eq.s32.totalorder 0, 0
    // Predicated region
    $region18: #{tpu_custom_call.1} parent=1 // pred_check
      %p53 = pneg %p52
    $region19: #{tpu_custom_call.1} parent=1 // pred_check_branch
      %55 = sbr.rel (%p53) target = $region21
    $region20: #{tpu_custom_call.1} parent=1 // pred_region
      %56 = vst [vmem:[#allocation2] sm:$0xff] 0.0
    $region21: #{tpu_custom_call.1} parent=1 // pred_fallthru
      _
    %v57 = vld [vmem:[#allocation3] sm:$0xff]
    %v58 = vld [vmem:[#allocation3 + $0x8] sm:$0xff]
    %v59 = vld [vmem:[#allocation6] sm:$0x3]
    %v60 = vld [vmem:[#allocation6 + $0x2] sm:$0x3]
    %v61 = vunpack.c.0.s8 %v59
    %v62 = vunpack.c.0.s8 %v60
    %v63 = vcvt.s32.f32 %v61
    %v64 = vcvt.s32.f32 %v62
    %v65 = vmax.f32 %v57, 0.0
    %v66 = vmax.f32 %v58, 0.0
    %v67 = vmul.f32 %v57, %v63
    %v68 = vmul.f32 %v58, %v64
    %v69 = vsub.f32 %v65, %v67
    %v70 = vsub.f32 %v66, %v68
    %v71 = vand.u32 2147483647, %v57
    %v72 = vand.u32 2147483647, %v58
    %v73 = vsub.f32 0.0, %v71
    %v74 = vsub.f32 0.0, %v72
    %v75 = vmul.f32 %v73, 1.442695
    %v76 = vpow.pop %v75
    %v77 = vmul.f32 %v74, 1.442695
    %v78 = vpow.pop %v77
    %v79 = vadd.f32 %v76, 1.0
    %v80 = vlog2.pop %v79
    %v81 = vmul.f32 %v80, 0.6931472
    %v82 = vmul.f32 -0.5, %v76
    %v83 = vadd.f32 %v82, 1.0
    %v84 = vmul.f32 %v83, %v76
    %v85 = vand.u32 2147483647, %v76
    %vm86 = vcmp.lt.f32.partialorder %v85, 0.0004427343
    %v87 = vsel %vm86, %v84, %v81
    %v88 = vadd.f32 %v78, 1.0
    %v89 = vlog2.pop %v88
    %v90 = vmul.f32 %v89, 0.6931472
    %v91 = vmul.f32 -0.5, %v78
    %v92 = vadd.f32 %v91, 1.0
    %v93 = vmul.f32 %v92, %v78
    %v94 = vand.u32 2147483647, %v78
    %vm95 = vcmp.lt.f32.partialorder %v94, 0.0004427343
    %v96 = vsel %vm95, %v93, %v90
    %v97 = vadd.f32 %v69, %v87
    %v98 = vadd.f32 %v70, %v96
    %v99 = vsub.f32 0.0, %v97
    %v100 = vsub.f32 0.0, %v98
    %v101 = vmul.f32 %v99, 1.442695
    %v102 = vpow.pop %v101
    %v103 = vmul.f32 %v100, 1.442695
    %v104 = vpow.pop %v103
    %v105 = vsub.f32 1.0, %v102
    %v106 = vsub.f32 1.0, %v104
    %v107 = vmul.f32 %v105, %v105
    %v108 = vmul.f32 %v106, %v106
    %v109 = vmul.f32 %v107, %v97
    %v110 = vmul.f32 %v108, %v98
    %v111 = vld [vmem:[#allocation2] sm:$0xff]
    %v112 = vadd.f32 %v109, %v110
    %v113 = vadd.f32 %v111, %v112
    %114 = vst [vmem:[#allocation2] sm:$0xff] %v113
    // Predicated region
    $region22: #{tpu_custom_call.1} parent=1 // pred_check
      %p115 = pneg %p52
    $region23: #{tpu_custom_call.1} parent=1 // pred_check_branch
      %117 = sbr.rel (%p115) target = $region25
    $region24: #{tpu_custom_call.1} parent=1 // pred_region
      %v118 = vld [vmem:[#allocation2] sm:$0xff]
      %119 = vst [vmem:[#allocation8] sm:$0xff] %v118
    $region25: #{tpu_custom_call.1} parent=1 // pred_fallthru
      _
    // Predicated region
    $region26: #{tpu_custom_call.1} parent=1 // pred_check
      _
    $region27: #{tpu_custom_call.1} parent=1 // pred_check_branch
      %121 = sbr.rel (0) target = $region29
    $region28: #{tpu_custom_call.1} parent=1 // pred_region
      %s123 = ssub.s32 128, 128
      %124 = vsyncadd [#allocation5], %s123
      %s126 = sshll.u32 [#allocation8], 4
      %s127 = int_to_ptr.vmem [resolvable:$true] %s126
      %129 = dma.vmem_to_hbm [thread:$0]  %s127, 128, %s2, [#allocation5]
    $region29: #{tpu_custom_call.1} parent=1 // pred_fallthru
      _
    // Predicated region
    $region30: #{tpu_custom_call.1} parent=1 // pred_check
      _
    $region31: #{tpu_custom_call.1} parent=1 // pred_check_branch
      %131 = sbr.rel (0) target = $region33
    $region32: #{tpu_custom_call.1} parent=1 // pred_region
      %132 = dma.done [#allocation5], 128
    $region33: #{tpu_custom_call.1} parent=1 // pred_fallthru
      _
    %133 = vsyncpa [#allocation4], 1
    %134 = vsyncpa [#allocation7], 1
    %135 = vsyncpa [#allocation5], 1

</llo_original>
